<compile_context>
chip_gen: v7x
topology: tpu7x:2x2x1
jax: 0.10.0
libtpu: 0.0.40
codegen_flags: <defaults>
</compile_context>

<pallas_src>
import jax
import jax.numpy as jnp
from jax.experimental import pallas as pl
from jax.experimental.pallas import tpu as pltpu

FACTOR = 0.5                      # self.factor in the PyTorch module
TILE_TARGET_BYTES = 8 << 20       # ~8 MiB per tile: flat part of tile-size curve
SPLIT_THRESHOLD_BYTES = 2 << 20   # above this, force >= 2 grid steps (v7x 2 TCs)
MAX_LANE = 1024                   # lane-dense last dim, multiple of 128


def _add_relu_kernel(x_ref, o_ref):
    # Pure elementwise hot path on the VPU: add constant, then ReLU.
    x = x_ref[...]
    o_ref[...] = jnp.maximum(x + jnp.asarray(FACTOR, x.dtype), 0)


def _round_up(a, m):
    return -(-a // m) * m


def my_test_model_forward(x):
    """y = relu(x + 0.5), same shape as x (any shape)."""
    # Match torch type promotion: add(int_tensor, 0.5) -> float tensor.
    if not jnp.issubdtype(x.dtype, jnp.inexact):
        x = x.astype(jnp.float32)

    orig_shape = x.shape
    n = x.size
    if n == 0:
        return x
    flat = x.reshape(-1)

    itemsize = x.dtype.itemsize
    sublane = {4: 8, 2: 16, 1: 32}.get(itemsize, 8)

    # Lane width: largest multiple of 128 (<= MAX_LANE) dividing n.
    # Fallback 128 + tiny (<=127 element) pad when n % 128 != 0.
    lane = 128
    upper = min(MAX_LANE, (n // 128) * 128)
    for cand in range(upper, 127, -128):
        if n % cand == 0:
            lane = cand
            break

    n_padded = _round_up(n, lane)
    if n_padded != n:
        # Rare path: only when n is not a multiple of 128.
        flat = jnp.pad(flat, (0, n_padded - n))
    rows = n_padded // lane
    x2d = flat.reshape(rows, lane)

    row_bytes = lane * itemsize
    total_bytes = rows * row_bytes

    # Tile sizing by bytes, not rows.
    row_block = max(sublane, (TILE_TARGET_BYTES // row_bytes) // sublane * sublane)
    if row_block >= rows:
        if total_bytes > SPLIT_THRESHOLD_BYTES:
            # Mid-size input: split into >= 2 blocks so both v7x TCs get work.
            row_block = max(sublane, _round_up(-(-rows // 2), sublane))
        else:
            # Small input: one full-extent block ((8,128) rule escape hatch).
            row_block = rows

    grid = (pl.cdiv(rows, row_block),)

    y2d = pl.pallas_call(
        _add_relu_kernel,
        out_shape=jax.ShapeDtypeStruct((rows, lane), x.dtype),
        grid=grid,
        in_specs=[pl.BlockSpec((row_block, lane), lambda i: (i, 0))],
        out_specs=pl.BlockSpec((row_block, lane), lambda i: (i, 0)),
        compiler_params=pltpu.CompilerParams(
            dimension_semantics=("parallel",),
            vmem_limit_bytes=48 << 20,
        ),
    )(x2d)

    y = y2d.reshape(-1)
    if n_padded != n:
        y = y[:n]
    return y.reshape(orig_shape)


if __name__ == "__main__":
    key = jax.random.PRNGKey(0)

    # NCHW input consistent with the module interface: (N=2, C=4, H=16, W=16)
    x = jax.random.normal(key, (2, 4, 16, 16), dtype=jnp.float32)
    y = jax.block_until_ready(my_test_model_forward(x))
    y_ref = jnp.maximum(x + FACTOR, 0)
    assert y.shape == x.shape and y.dtype == x.dtype
    assert jnp.allclose(y, y_ref, atol=0, rtol=0), "mismatch vs reference"

    # Small ragged shape to exercise the (rare) lane-remainder pad path.
    x2 = jax.random.normal(jax.random.PRNGKey(1), (3, 5, 7, 11), dtype=jnp.float32)
    y2 = jax.block_until_ready(my_test_model_forward(x2))
    assert jnp.allclose(y2, jnp.maximum(x2 + FACTOR, 0), atol=0, rtol=0)

    print("KERNEL_OK")
</pallas_src>

<mosaic_0001>
module attributes {stable_mosaic.version = 11 : i64} {
  func.func @_add_relu_kernel(%arg0: i32, %arg1: memref<2x1024xf32, #tpu.memory_space<vmem>>, %arg2: memref<2x1024xf32, #tpu.memory_space<vmem>>) attributes {dimension_semantics = [#tpu.dimension_semantics<parallel>], iteration_bounds = array<i64: 1>, scalar_prefetch = 0 : i64, scratch_operands = 0 : i64, tpu.core_type = #tpu.core_type<tc>, window_params = [{transform_indices = @transform_0, window_bounds = array<i64: 2, 1024>}, {transform_indices = @transform_1, window_bounds = array<i64: 2, 1024>}]} {
    %c0 = arith.constant 0 : index
    %c0_0 = arith.constant 0 : index
    %0 = vector.load %arg1[%c0, %c0_0] : memref<2x1024xf32, #tpu.memory_space<vmem>>, vector<2x1024xf32>
    %cst = arith.constant 5.000000e-01 : f32
    %1 = vector.broadcast %cst : f32 to vector<2x1024xf32>
    %2 = arith.addf %0, %1 : vector<2x1024xf32>
    %cst_1 = arith.constant 0.000000e+00 : f32
    %3 = vector.broadcast %cst_1 : f32 to vector<2x1024xf32>
    %4 = arith.maximumf %2, %3 : vector<2x1024xf32>
    %c0_2 = arith.constant 0 : index
    %c0_3 = arith.constant 0 : index
    %5 = vector.load %arg2[%c0_2, %c0_3] : memref<2x1024xf32, #tpu.memory_space<vmem>>, vector<2x1024xf32>
    tpu.vector_store %arg2[%c0_2, %c0_3], %4 {strides = array<i32>} : memref<2x1024xf32, #tpu.memory_space<vmem>>, vector<2x1024xf32>,
    return
  }
  func.func @transform_0(%arg0: i32) -> (i32, i32) {
    %c0_i32 = arith.constant 0 : i32
    %c0_i32_0 = arith.constant 0 : i32
    return %arg0, %c0_i32 : i32, i32
  }
  func.func @transform_1(%arg0: i32) -> (i32, i32) {
    %c0_i32 = arith.constant 0 : i32
    %c0_i32_0 = arith.constant 0 : i32
    return %arg0, %c0_i32 : i32, i32
  }
}

</mosaic_0001>

<llo_original>
// kernel: tpu_custom_call.1
$region0: #{tpu_custom_call.1}
  #allocation0 [shape = 'u32[]', space=smem, size = 0x4, offset = 0x4, fixed_abs, tag = 'smem constant byte address 0x4 - core index']
  #allocation1 [shape = 'u32[144,128]{1,0:T(1,128)}', space=vmem, size = 0x12000, scoped, tag = 'internal scratch']
  %s0 = inlined_call_operand.hbm [shape: f32[2,1024], index: 0, kind: input, shape index: {}]
  %s1 = inlined_call_operand.hbm [shape: f32[2,1024], index: 1, kind: output, shape index: {}]
  %s2 = sld [smem:[#allocation0]]
  $region18: #{tpu_custom_call.1} parent=0
    _
  %s4 = ssub.s32 1, %s2
  %s5 = scalar_select 0, %s4, %s2
  $region1: #{tpu_custom_call.1} parent=0
    #allocation2 [shape = 'u8[8192]{0}', space=vmem, size = 0x2000, scoped, tag = 'input window, operand 0, single buffered']
    #allocation3 [shape = 's32[1]{0}', space=sflag, size = 0x4, scoped, tag = 'scoped memory for tpu_custom_call.1']
    #allocation4 [shape = 's32[1]{0}', space=sflag, size = 0x4, scoped, tag = 'scoped memory for tpu_custom_call.1']
    #allocation5 [shape = 'u8[8192]{0}', space=vmem, size = 0x2000, scoped, tag = 'output window, operand 0, single buffered']
    %6 = vsyncpa [#allocation3], 0
    %7 = vsyncpa [#allocation4], 0
    // Predicated region
    $region2: #{tpu_custom_call.1} parent=1 // pred_check
      _
    $region3: #{tpu_custom_call.1} parent=1 // pred_check_branch
      %9 = sbr.rel (0) target = $region5
    $region4: #{tpu_custom_call.1} parent=1 // pred_region
      %s11 = ssub.s32 256, 256
      %12 = vsyncadd [#allocation3], %s11
      %s14 = sshll.u32 [#allocation2], 4
      %s15 = int_to_ptr.vmem [resolvable:$true] %s14
      %17 = dma.hbm_to_vmem [thread:$0]  %s0, 256, %s15, [#allocation3]
    $region5: #{tpu_custom_call.1} parent=1 // pred_fallthru
      _
    // Predicated region
    $region6: #{tpu_custom_call.1} parent=1 // pred_check
      _
    $region7: #{tpu_custom_call.1} parent=1 // pred_check_branch
      %19 = sbr.rel (0) target = $region9
    $region8: #{tpu_custom_call.1} parent=1 // pred_region
      %20 = dma.done [#allocation3], 256
    $region9: #{tpu_custom_call.1} parent=1 // pred_fallthru
      _
    %v21 = vld [vmem:[#allocation2] sm:$0xff]
    %v22 = vld [vmem:[#allocation2 + $0x8] sm:$0xff]
    %v23 = vadd.f32 %v21, 0.5
    %v24 = vadd.f32 %v22, 0.5
    %v25 = vmax.f32 %v23, 0.0
    %v26 = vmax.f32 %v24, 0.0
    %27 = vst [vmem:[#allocation5] sm:$0xff] %v25
    %28 = vst [vmem:[#allocation5 + $0x8] sm:$0xff] %v26
    // Predicated region
    $region10: #{tpu_custom_call.1} parent=1 // pred_check
      _
    $region11: #{tpu_custom_call.1} parent=1 // pred_check_branch
      %30 = sbr.rel (0) target = $region13
    $region12: #{tpu_custom_call.1} parent=1 // pred_region
      %s32 = ssub.s32 256, 256
      %33 = vsyncadd [#allocation4], %s32
      %s35 = sshll.u32 [#allocation5], 4
      %s36 = int_to_ptr.vmem [resolvable:$true] %s35
      %38 = dma.vmem_to_hbm [thread:$0]  %s36, 256, %s1, [#allocation4]
    $region13: #{tpu_custom_call.1} parent=1 // pred_fallthru
      _
    // Predicated region
    $region14: #{tpu_custom_call.1} parent=1 // pred_check
      _
    $region15: #{tpu_custom_call.1} parent=1 // pred_check_branch
      %40 = sbr.rel (0) target = $region17
    $region16: #{tpu_custom_call.1} parent=1 // pred_region
      %41 = dma.done [#allocation4], 256
    $region17: #{tpu_custom_call.1} parent=1 // pred_fallthru
      _
    %42 = vsyncpa [#allocation3], 1
    %43 = vsyncpa [#allocation4], 1

</llo_original>
